<compile_context>
chip_gen: v5e
topology: v5e:2x2
jax: 0.10.0
libtpu: 0.0.40
codegen_flags: <defaults>
</compile_context>

<pallas_src>
import numpy as np

import jax
import jax.numpy as jnp
from jax.experimental import pallas as pl
from jax.experimental.pallas import tpu as pltpu


# ----------------------------------------------------------------------------
# host helpers
# ----------------------------------------------------------------------------
def _round_up(x, m):
    return ((x + m - 1) // m) * m


def _adaptive_pool_matrix(out_size, in_size):
    """R[o, i] such that R @ x == 1-D PyTorch adaptive average pool of x."""
    R = np.zeros((out_size, in_size), np.float32)
    for o in range(out_size):
        start = (o * in_size) // out_size
        end = -(-((o + 1) * in_size) // out_size)  # ceil
        R[o, start:end] = 1.0 / (end - start)
    return R


def _pick_tile_k(K, cap):
    """Reduction tile: full K if it fits, else the largest multiple of 128
    dividing K (lane-dim constraint on the cue block); fall back to K."""
    if K <= cap:
        return K
    t = (cap // 128) * 128
    while t >= 128:
        if K % t == 0:
            return t
        t -= 128
    return K


# ----------------------------------------------------------------------------
# Pallas kernel
# ----------------------------------------------------------------------------
def _gain_mod_kernel(scalars_ref, cue_ref, pool_ref, mix_ref, out_ref, acc_ref):
    # scalars_ref : SMEM (3,)  = [threshold, slope, bias]          (f32)
    # cue_ref     : VMEM (tile_r, tile_k)         bf16 cue rows
    # pool_ref    : VMEM (tile_k, HWp)            bf16 pooling matrix tile
    # mix_ref     : VMEM (tile_r, HWp)  or  (tile_r, C, HWp)       caller dtype
    # out_ref     : same shape/dtype as mix_ref
    # acc_ref     : VMEM (tile_r, HWp) f32 accumulator (pooled cue)
    k = pl.program_id(1)

    @pl.when(k == 0)
    def _init():
        acc_ref[...] = jnp.zeros_like(acc_ref)

    # adaptive average pool == MXU matmul, f32 accumulation over K tiles
    acc_ref[...] += jnp.dot(cue_ref[...], pool_ref[...],
                            preferred_element_type=jnp.float32)

    @pl.when(k == pl.num_programs(1) - 1)
    def _finalize():
        thr = scalars_ref[0]
        slope = scalars_ref[1]
        bias = scalars_ref[2]
        # gate math kept in f32 (v5e has no bf16 VPU/EUP path)
        gate = bias + (1.0 - bias) * jax.nn.sigmoid((acc_ref[...] - thr) * slope)
        mix = mix_ref[...].astype(jnp.float32)
        if len(mix_ref.shape) == 3:
            # single-channel cue: broadcast the per-batch gate across channels
            gate = gate[:, None, :]
        out_ref[...] = (mix * gate).astype(out_ref.dtype)


# ----------------------------------------------------------------------------
# JAX wrapper
# ----------------------------------------------------------------------------
def attentional_gain_modulation_forward(cue, mixture, threshold, slope, bias,
                                        spatial_size, *,
                                        matmul_dtype=jnp.bfloat16):
    H, W = spatial_size
    B, C, Hm, Wm = mixture.shape
    assert (Hm, Wm) == (H, W), "mixture spatial size must equal spatial_size"
    Bc, Cc, h_in, w_in = cue.shape
    assert Bc == B, "cue batch must match mixture batch"
    assert Cc in (1, C), "cue channels must be 1 or match mixture channels"

    HW = H * W
    HWp = _round_up(HW, 128)            # lane-dense output stores
    K = h_in * w_in
    out_dtype = mixture.dtype
    kdt = jnp.dtype(matmul_dtype).itemsize
    elt = jnp.dtype(out_dtype).itemsize

    # separable adaptive-avg-pool matrix, flattened spatial: (K, HWp)
    pool_np = np.kron(_adaptive_pool_matrix(H, h_in),
                      _adaptive_pool_matrix(W, w_in)).T.astype(np.float32)
    if HWp != HW:
        pool_np = np.pad(pool_np, ((0, 0), (0, HWp - HW)))
    pool = jnp.asarray(pool_np, dtype=matmul_dtype)

    # cue rows feed the MXU; mixture/out keep the caller's dtype & row count.
    # NOTE: for an f32-native caller the bf16 cast of cue ideally fuses into
    # its producer; inside the kernel the matmul accumulates in f32.
    cue2d = cue.reshape(B * Cc, K).astype(matmul_dtype)
    mix3 = mixture.reshape(B, C, HW)
    if HWp != HW:
        mix3 = jnp.pad(mix3, ((0, 0), (0, 0), (0, HWp - HW)))

    rows = B * Cc            # MXU M dimension (cue rows)
    rep = C // Cc            # mixture rows modulated per cue row

    # ---- reduction (K) tiling: bound pool tile to ~4 MiB per buffer --------
    tile_k = _pick_tile_k(K, cap=max(128, (4 * 1024 * 1024) // (HWp * kdt)))

    # ---- row tiling: ~24 MiB VMEM target (under 32 MiB scoped default) -----
    per_row = 2 * tile_k * kdt + rep * HWp * 4 * elt + HWp * 4
    budget = 24 * 1024 * 1024 - 2 * tile_k * HWp * kdt
    cap_rows = max(8, (budget // per_row) // 8 * 8)
    if rows <= 8:
        tile_r = rows                        # single block == full dim (legal)
    else:
        tile_r = min(512, cap_rows, _round_up(rows, 8))
        # keep >= 2 parallel row tiles where possible (v7x: 2 TensorCores)
        if pl.cdiv(rows, tile_r) < 2:
            tile_r = max(8, _round_up(pl.cdiv(rows, 2), 8))
    grid = (pl.cdiv(rows, tile_r), pl.cdiv(K, tile_k))

    # ---- specs --------------------------------------------------------------
    if Cc == C:
        mix_arr = mix3.reshape(B * C, HWp)
        mix_spec = pl.BlockSpec((tile_r, HWp), lambda i, k: (i, 0))
        out_shape = jax.ShapeDtypeStruct((B * C, HWp), out_dtype)
    else:
        mix_arr = mix3                        # (B, C, HWp), gate broadcast in-kernel
        mix_spec = pl.BlockSpec((tile_r, C, HWp), lambda i, k: (i, 0, 0))
        out_shape = jax.ShapeDtypeStruct((B, C, HWp), out_dtype)

    scalars = jnp.stack([
        jnp.asarray(threshold, jnp.float32).reshape(()),
        jnp.asarray(slope, jnp.float32).reshape(()),
        jnp.asarray(bias, jnp.float32).reshape(()),
    ])  # (3,) in SMEM

    cost = pl.CostEstimate(
        flops=int(2 * rows * K * HWp),
        transcendentals=int(rows * HWp),
        bytes_accessed=int(rows * K * kdt + K * HWp * kdt + 2 * B * C * HWp * elt),
    )

    out_flat = pl.pallas_call(
        _gain_mod_kernel,
        out_shape=out_shape,
        grid_spec=pltpu.PrefetchScalarGridSpec(
            num_scalar_prefetch=0,
            grid=grid,
            in_specs=[
                pl.BlockSpec(memory_space=pltpu.MemorySpace.SMEM),      # scalars
                pl.BlockSpec((tile_r, tile_k), lambda i, k: (i, k)),    # cue rows
                pl.BlockSpec((tile_k, HWp), lambda i, k: (k, 0)),       # pool tile
                mix_spec,                                               # mixture
            ],
            out_specs=mix_spec,
            scratch_shapes=[pltpu.VMEM((tile_r, HWp), jnp.float32)],    # pooled acc
        ),
        compiler_params=pltpu.CompilerParams(
            dimension_semantics=("parallel", "arbitrary"),
        ),
        cost_estimate=cost,
    )(scalars, cue2d, pool, mix_arr)

    out = out_flat.reshape(B, C, HWp) if Cc == C else out_flat
    if HWp != HW:
        out = out[..., :HW]
    return out.reshape(B, C, H, W)


# ----------------------------------------------------------------------------
# Independent reference (numpy, mirrors the PyTorch forward) for verification
# ----------------------------------------------------------------------------
def _reference_forward(cue, mixture, threshold, slope, bias, spatial_size):
    H, W = spatial_size
    cue = np.asarray(cue, np.float64)
    mixture = np.asarray(mixture, np.float64)
    B, Cc, h_in, w_in = cue.shape
    pooled = np.zeros((B, Cc, H, W), np.float64)
    for oh in range(H):
        hs = (oh * h_in) // H
        he = -(-((oh + 1) * h_in) // H)
        for ow in range(W):
            ws = (ow * w_in) // W
            we = -(-((ow + 1) * w_in) // W)
            pooled[:, :, oh, ow] = cue[:, :, hs:he, ws:we].mean(axis=(2, 3))
    g = (pooled - threshold) * slope
    gate = bias + (1.0 - bias) * (1.0 / (1.0 + np.exp(-g)))
    return mixture * gate


# ----------------------------------------------------------------------------
if __name__ == "__main__":
    key = jax.random.PRNGKey(0)
    k1, k2, k3 = jax.random.split(key, 3)

    B, C = 2, 4
    H, W = 16, 16          # spatial_size
    h_in, w_in = 32, 32    # cue is adaptively pooled down to (H, W)

    # module parameters (shape (1,) each); non-default so the math is exercised
    threshold = jnp.asarray([0.1], jnp.float32)
    slope = jnp.asarray([1.5], jnp.float32)
    bias = jnp.asarray([0.25], jnp.float32)

    mixture = jax.random.normal(k2, (B, C, H, W), dtype=jnp.float32)

    # case 1: cue channels == mixture channels
    cue = jax.random.normal(k1, (B, C, h_in, w_in), dtype=jnp.float32)
    out = jax.block_until_ready(attentional_gain_modulation_forward(
        cue, mixture, threshold, slope, bias, (H, W)))
    assert out.shape == (B, C, H, W)
    ref = _reference_forward(cue, mixture, 0.1, 1.5, 0.25, (H, W))
    np.testing.assert_allclose(np.asarray(out, np.float64), ref,
                               rtol=2e-2, atol=2e-2)   # bf16 matmul operands

    # case 2: single-channel cue -> pooled once per batch, gate broadcast
    #         across channels inside the kernel (no host-side broadcast)
    cue1 = jax.random.normal(k3, (B, 1, h_in, w_in), dtype=jnp.float32)
    out1 = jax.block_until_ready(attentional_gain_modulation_forward(
        cue1, mixture, threshold, slope, bias, (H, W)))
    assert out1.shape == (B, C, H, W)
    ref1 = _reference_forward(cue1, mixture, 0.1, 1.5, 0.25, (H, W))
    np.testing.assert_allclose(np.asarray(out1, np.float64), ref1,
                               rtol=2e-2, atol=2e-2)

    # TODO(synk): the module's `use_cache` / `self.cached` branch is host-side
    # stateful caching (reuses the previously computed gate) and is not
    # represented inside the kernel; only op == 'mul' is implemented.
    print("KERNEL_OK")
</pallas_src>

<mosaic_0001>
module attributes {stable_mosaic.version = 11 : i64} {
  func.func @_gain_mod_kernel(%arg0: i32, %arg1: i32, %arg2: memref<3xf32, #tpu.memory_space<smem>>, %arg3: memref<8x1024xbf16, #tpu.memory_space<vmem>>, %arg4: memref<1024x256xbf16, #tpu.memory_space<vmem>>, %arg5: memref<8x256xf32, #tpu.memory_space<vmem>>, %arg6: memref<8x256xf32, #tpu.memory_space<vmem>>, %arg7: memref<8x256xf32, #tpu.memory_space<vmem>>) attributes {dimension_semantics = [#tpu.dimension_semantics<parallel>, #tpu.dimension_semantics<arbitrary>], iteration_bounds = array<i64: 1, 1>, scalar_prefetch = 0 : i64, scratch_operands = 1 : i64, tpu.core_type = #tpu.core_type<tc>, window_params = [{transform_indices = @transform_0, window_bounds = array<i64: 3>}, {transform_indices = @transform_1, window_bounds = array<i64: 8, 1024>}, {transform_indices = @transform_2, window_bounds = array<i64: 1024, 256>}, {transform_indices = @transform_3, window_bounds = array<i64: 8, 256>}, {transform_indices = @transform_4, window_bounds = array<i64: 8, 256>}]} {
    %c0_i32 = arith.constant 0 : i32
    %0 = arith.cmpi eq, %arg1, %c0_i32 : i32
    %1 = arith.extui %0 : i1 to i32
    %c0_i32_0 = arith.constant 0 : i32
    %2 = arith.cmpi ne, %1, %c0_i32_0 : i32
    scf.if %2 {
      %cst_10 = arith.constant 0.000000e+00 : f32
      %12 = vector.broadcast %cst_10 : f32 to vector<8x256xf32>
      %c0_11 = arith.constant 0 : index
      %c0_12 = arith.constant 0 : index
      %13 = vector.load %arg7[%c0_11, %c0_12] : memref<8x256xf32, #tpu.memory_space<vmem>>, vector<8x256xf32>
      tpu.vector_store %arg7[%c0_11, %c0_12], %12 {strides = array<i32>} : memref<8x256xf32, #tpu.memory_space<vmem>>, vector<8x256xf32>,
    } else {
    }
    %c0 = arith.constant 0 : index
    %c0_1 = arith.constant 0 : index
    %3 = vector.load %arg7[%c0, %c0_1] : memref<8x256xf32, #tpu.memory_space<vmem>>, vector<8x256xf32>
    %c0_2 = arith.constant 0 : index
    %c0_3 = arith.constant 0 : index
    %4 = vector.load %arg3[%c0_2, %c0_3] : memref<8x1024xbf16, #tpu.memory_space<vmem>>, vector<8x1024xbf16>
    %c0_4 = arith.constant 0 : index
    %c0_5 = arith.constant 0 : index
    %5 = vector.load %arg4[%c0_4, %c0_5] : memref<1024x256xbf16, #tpu.memory_space<vmem>>, vector<1024x256xbf16>
    %cst = arith.constant dense<0.000000e+00> : vector<8x256xf32>
    %6 = tpu.matmul %4, %5, %cst {dimension_numbers = #tpu.dot_dimension_numbers<[1], [0], [0], [1], [0, 0, 1, 1], [], []>} : vector<8x1024xbf16>, vector<1024x256xbf16>, vector<8x256xf32> -> vector<8x256xf32>
    %7 = arith.addf %3, %6 : vector<8x256xf32>
    %c0_6 = arith.constant 0 : index
    %c0_7 = arith.constant 0 : index
    %8 = vector.load %arg7[%c0_6, %c0_7] : memref<8x256xf32, #tpu.memory_space<vmem>>, vector<8x256xf32>
    tpu.vector_store %arg7[%c0_6, %c0_7], %7 {strides = array<i32>} : memref<8x256xf32, #tpu.memory_space<vmem>>, vector<8x256xf32>,
    %c0_i32_8 = arith.constant 0 : i32
    %9 = arith.cmpi eq, %arg1, %c0_i32_8 : i32
    %10 = arith.extui %9 : i1 to i32
    %c0_i32_9 = arith.constant 0 : i32
    %11 = arith.cmpi ne, %10, %c0_i32_9 : i32
    scf.if %11 {
      %c0_10 = arith.constant 0 : index
      %12 = memref.load %arg2[%c0_10] : memref<3xf32, #tpu.memory_space<smem>>
      %c1 = arith.constant 1 : index
      %13 = memref.load %arg2[%c1] : memref<3xf32, #tpu.memory_space<smem>>
      %c2 = arith.constant 2 : index
      %14 = memref.load %arg2[%c2] : memref<3xf32, #tpu.memory_space<smem>>
      %cst_11 = arith.constant 1.000000e+00 : f32
      %15 = arith.subf %cst_11, %14 : f32
      %c0_12 = arith.constant 0 : index
      %c0_13 = arith.constant 0 : index
      %16 = vector.load %arg7[%c0_12, %c0_13] : memref<8x256xf32, #tpu.memory_space<vmem>>, vector<8x256xf32>
      %17 = vector.broadcast %12 : f32 to vector<8x256xf32>
      %18 = arith.subf %16, %17 : vector<8x256xf32>
      %19 = vector.broadcast %13 : f32 to vector<8x256xf32>
      %20 = arith.mulf %18, %19 : vector<8x256xf32>
      %21 = arith.negf %20 : vector<8x256xf32>
      %22 = math.exp %21 : vector<8x256xf32>
      %cst_14 = arith.constant 1.000000e+00 : f32
      %23 = vector.broadcast %cst_14 : f32 to vector<8x256xf32>
      %24 = arith.addf %23, %22 : vector<8x256xf32>
      %25 = arith.divf %23, %24 : vector<8x256xf32>
      %26 = vector.broadcast %15 : f32 to vector<8x256xf32>
      %27 = arith.mulf %26, %25 : vector<8x256xf32>
      %28 = vector.broadcast %14 : f32 to vector<8x256xf32>
      %29 = arith.addf %28, %27 : vector<8x256xf32>
      %c0_15 = arith.constant 0 : index
      %c0_16 = arith.constant 0 : index
      %30 = vector.load %arg5[%c0_15, %c0_16] : memref<8x256xf32, #tpu.memory_space<vmem>>, vector<8x256xf32>
      %31 = arith.mulf %30, %29 : vector<8x256xf32>
      %c0_17 = arith.constant 0 : index
      %c0_18 = arith.constant 0 : index
      %32 = vector.load %arg6[%c0_17, %c0_18] : memref<8x256xf32, #tpu.memory_space<vmem>>, vector<8x256xf32>
      tpu.vector_store %arg6[%c0_17, %c0_18], %31 {strides = array<i32>} : memref<8x256xf32, #tpu.memory_space<vmem>>, vector<8x256xf32>,
    } else {
    }
    return
  }
  func.func @transform_0(%arg0: i32, %arg1: i32) -> i32 {
    %c0_i32 = arith.constant 0 : i32
    %c0_i32_0 = arith.constant 0 : i32
    return %c0_i32 : i32
  }
  func.func @transform_1(%arg0: i32, %arg1: i32) -> (i32, i32) {
    %c0_i32 = arith.constant 0 : i32
    return %arg0, %arg1 : i32, i32
  }
  func.func @transform_2(%arg0: i32, %arg1: i32) -> (i32, i32) {
    %c0_i32 = arith.constant 0 : i32
    %c0_i32_0 = arith.constant 0 : i32
    return %arg1, %c0_i32 : i32, i32
  }
  func.func @transform_3(%arg0: i32, %arg1: i32) -> (i32, i32) {
    %c0_i32 = arith.constant 0 : i32
    %c0_i32_0 = arith.constant 0 : i32
    return %arg0, %c0_i32 : i32, i32
  }
  func.func @transform_4(%arg0: i32, %arg1: i32) -> (i32, i32) {
    %c0_i32 = arith.constant 0 : i32
    %c0_i32_0 = arith.constant 0 : i32
    return %arg0, %c0_i32 : i32, i32
  }
}

</mosaic_0001>

<llo_original>
// kernel: tpu_custom_call.1
$region0: #{tpu_custom_call.1}
  #allocation0 [shape = 'u32[]', space=smem, size = 0x4, offset = 0x4, fixed_abs, tag = 'smem constant byte address 0x4 - core index']
  #allocation1 [shape = 'u32[72,128]{1,0:T(1,128)}', space=vmem, size = 0x9000, scoped, tag = 'internal scratch']
  #allocation2 [shape = 'f32[8,256]{1,0:T(8,128)}', space=vmem, size = 0x2000, scoped, tag = 'scratch operand']
  %s0 = inlined_call_operand.hbm [shape: f32[3], index: 0, kind: input, shape index: {}]
  %s1 = inlined_call_operand.hbm [shape: bf16[8,1024], index: 1, kind: input, shape index: {}]
  %s2 = inlined_call_operand.hbm [shape: bf16[1024,256], index: 2, kind: input, shape index: {}]
  %s3 = inlined_call_operand.hbm [shape: f32[8,256], index: 3, kind: input, shape index: {}]
  %s4 = inlined_call_operand.hbm [shape: f32[8,256], index: 4, kind: output, shape index: {}]
  %s5 = sld [smem:[#allocation0]]
  $region50: #{tpu_custom_call.1} parent=0
    _
  %s7 = ssub.s32 1, %s5
  %s8 = scalar_select 0, %s7, %s5
  $region1: #{tpu_custom_call.1} parent=0
    #allocation3 [shape = 'u8[512]{0}', space=smem, size = 0x200, scoped, tag = 'input window, operand 0, single buffered']
    #allocation4 [shape = 's32[1]{0}', space=sflag, size = 0x4, scoped, tag = 'scoped memory for tpu_custom_call.1']
    #allocation5 [shape = 's32[1]{0}', space=sflag, size = 0x4, scoped, tag = 'scoped memory for tpu_custom_call.1']
    #allocation6 [shape = 's32[1]{0}', space=sflag, size = 0x4, scoped, tag = 'scoped memory for tpu_custom_call.1']
    #allocation7 [shape = 'u8[16384]{0}', space=vmem, size = 0x4000, scoped, tag = 'input window, operand 1, single buffered']
    #allocation8 [shape = 'u8[524288]{0}', space=vmem, size = 0x80000, scoped, tag = 'input window, operand 2, single buffered']
    #allocation9 [shape = 's32[1]{0}', space=sflag, size = 0x4, scoped, tag = 'scoped memory for tpu_custom_call.1']
    #allocation10 [shape = 'u8[8192]{0}', space=vmem, size = 0x2000, scoped, tag = 'input window, operand 3, single buffered']
    #allocation11 [shape = 'u8[8192]{0}', space=vmem, size = 0x2000, scoped, tag = 'output window, operand 0, single buffered']
    %9 = vsyncpa [#allocation6], 0
    %10 = vsyncpa [#allocation4], 0
    %11 = vsyncpa [#allocation9], 0
    %12 = vsyncpa [#allocation5], 0
    // Predicated region
    $region2: #{tpu_custom_call.1} parent=1 // pred_check
      _
    $region3: #{tpu_custom_call.1} parent=1 // pred_check_branch
      %14 = sbr.rel (0) target = $region5
    $region4: #{tpu_custom_call.1} parent=1 // pred_region
      %16 = vsyncadd [#allocation6], 0
      %s18 = sshll.u32 %s0, 4
      %s19 = int_to_ptr.hbm [resolvable:$true] %s18
      %21 = dma.hbm_to_smem %s19, 16, [#allocation3], [#allocation6]
    $region5: #{tpu_custom_call.1} parent=1 // pred_fallthru
      _
    // Predicated region
    $region6: #{tpu_custom_call.1} parent=1 // pred_check
      _
    $region7: #{tpu_custom_call.1} parent=1 // pred_check_branch
      %23 = sbr.rel (0) target = $region9
    $region8: #{tpu_custom_call.1} parent=1 // pred_region
      %25 = vsyncadd [#allocation4], 0
      %s27 = sshll.u32 %s1, 4
      %s28 = int_to_ptr.hbm [resolvable:$true] %s27
      %s29 = sshll.u32 [#allocation7], 4
      %s30 = int_to_ptr.vmem [resolvable:$true] %s29
      %32 = dma.hbm_to_vmem [thread:$0]  %s28, 512, %s30, [#allocation4]
    $region9: #{tpu_custom_call.1} parent=1 // pred_fallthru
      _
    // Predicated region
    $region10: #{tpu_custom_call.1} parent=1 // pred_check
      _
    $region11: #{tpu_custom_call.1} parent=1 // pred_check_branch
      %34 = sbr.rel (0) target = $region13
    $region12: #{tpu_custom_call.1} parent=1 // pred_region
      %36 = vsyncadd [#allocation9], 0
      %s37 = sshll.u32 %s2, 4
      %s38 = int_to_ptr.hbm [resolvable:$true] %s37
      %s39 = sshll.u32 [#allocation8], 4
      %s40 = int_to_ptr.vmem [resolvable:$true] %s39
      %45 = dma.hbm_to_vmem [thread:$0]  %s38, 16384, %s40, [#allocation9], 128, 128, 8
    $region13: #{tpu_custom_call.1} parent=1 // pred_fallthru
      _
    // Predicated region
    $region14: #{tpu_custom_call.1} parent=1 // pred_check
      _
    $region15: #{tpu_custom_call.1} parent=1 // pred_check_branch
      %47 = sbr.rel (0) target = $region17
    $region16: #{tpu_custom_call.1} parent=1 // pred_region
      %49 = vsyncadd [#allocation9], 0
      %s51 = sshll.u32 %s3, 4
      %s52 = int_to_ptr.hbm [resolvable:$true] %s51
      %s53 = sshll.u32 [#allocation10], 4
      %s54 = int_to_ptr.vmem [resolvable:$true] %s53
      %56 = dma.hbm_to_vmem [thread:$0]  %s52, 256, %s54, [#allocation9]
    $region17: #{tpu_custom_call.1} parent=1 // pred_fallthru
      _
    // Predicated region
    $region18: #{tpu_custom_call.1} parent=1 // pred_check
      _
    $region19: #{tpu_custom_call.1} parent=1 // pred_check_branch
      %58 = sbr.rel (0) target = $region21
    $region20: #{tpu_custom_call.1} parent=1 // pred_region
      %60 = dma.done [#allocation6], 16
    $region21: #{tpu_custom_call.1} parent=1 // pred_fallthru
      _
    // Predicated region
    $region22: #{tpu_custom_call.1} parent=1 // pred_check
      _
    $region23: #{tpu_custom_call.1} parent=1 // pred_check_branch
      %62 = sbr.rel (0) target = $region25
    $region24: #{tpu_custom_call.1} parent=1 // pred_region
      %64 = dma.done [#allocation4], 512
    $region25: #{tpu_custom_call.1} parent=1 // pred_fallthru
      _
    // Predicated region
    $region26: #{tpu_custom_call.1} parent=1 // pred_check
      _
    $region27: #{tpu_custom_call.1} parent=1 // pred_check_branch
      %66 = sbr.rel (0) target = $region29
    $region28: #{tpu_custom_call.1} parent=1 // pred_region
      %68 = dma.done [#allocation9], 16384
    $region29: #{tpu_custom_call.1} parent=1 // pred_fallthru
      _
    // Predicated region
    $region30: #{tpu_custom_call.1} parent=1 // pred_check
      _
    $region31: #{tpu_custom_call.1} parent=1 // pred_check_branch
      %70 = sbr.rel (0) target = $region33
    $region32: #{tpu_custom_call.1} parent=1 // pred_region
      %72 = dma.done [#allocation9], 256
    $region33: #{tpu_custom_call.1} parent=1 // pred_fallthru
      _
    %73 = sfence
    %p74 = scmp.eq.s32.totalorder 0, 0
    // Predicated region
    $region34: #{tpu_custom_call.1} parent=1 // pred_check
      %p75 = pneg %p74
    $region35: #{tpu_custom_call.1} parent=1 // pred_check_branch
      %77 = sbr.rel (%p75) target = $region37
    $region36: #{tpu_custom_call.1} parent=1 // pred_region
      %78 = vst [vmem:[#allocation2] sm:$0xff] 0.0
      %79 = vst [vmem:[#allocation2 + $0x8] sm:$0xff] 0.0
    $region37: #{tpu_custom_call.1} parent=1 // pred_fallthru
      _
    %v80 = vld [vmem:[#allocation2] sm:$0xff]
    %v81 = vld [vmem:[#allocation2 + $0x8] sm:$0xff]
    %v82 = vld [vmem:[#allocation7] sm:$0xff]
    %v83 = vld [vmem:[#allocation7 + $0x8] sm:$0xff]
    %v84 = vld [vmem:[#allocation7 + $0x10] sm:$0xff]
    %v85 = vld [vmem:[#allocation7 + $0x18] sm:$0xff]
    %v86 = vld [vmem:[#allocation8] sm:$0xff]
    %v87 = vld [vmem:[#allocation8 + $0x8] sm:$0xff]
    %v88 = vld [vmem:[#allocation8 + $0x10] sm:$0xff]
    %v89 = vld [vmem:[#allocation8 + $0x18] sm:$0xff]
    %v90 = vld [vmem:[#allocation8 + $0x20] sm:$0xff]
    %v91 = vld [vmem:[#allocation8 + $0x28] sm:$0xff]
    %v92 = vld [vmem:[#allocation8 + $0x30] sm:$0xff]
    %v93 = vld [vmem:[#allocation8 + $0x38] sm:$0xff]
    %v94 = vld [vmem:[#allocation8 + $0x40] sm:$0xff]
    %v95 = vld [vmem:[#allocation8 + $0x48] sm:$0xff]
    %v96 = vld [vmem:[#allocation8 + $0x50] sm:$0xff]
    %v97 = vld [vmem:[#allocation8 + $0x58] sm:$0xff]
    %v98 = vld [vmem:[#allocation8 + $0x60] sm:$0xff]
    %v99 = vld [vmem:[#allocation8 + $0x68] sm:$0xff]
    %v100 = vld [vmem:[#allocation8 + $0x70] sm:$0xff]
    %v101 = vld [vmem:[#allocation8 + $0x78] sm:$0xff]
    %v102 = vld [vmem:[#allocation8 + $0x80] sm:$0xff]
    %v103 = vld [vmem:[#allocation8 + $0x88] sm:$0xff]
    %v104 = vld [vmem:[#allocation8 + $0x90] sm:$0xff]
    %v105 = vld [vmem:[#allocation8 + $0x98] sm:$0xff]
    %v106 = vld [vmem:[#allocation8 + $0xa0] sm:$0xff]
    %v107 = vld [vmem:[#allocation8 + $0xa8] sm:$0xff]
    %v108 = vld [vmem:[#allocation8 + $0xb0] sm:$0xff]
    %v109 = vld [vmem:[#allocation8 + $0xb8] sm:$0xff]
    %v110 = vld [vmem:[#allocation8 + $0xc0] sm:$0xff]
    %v111 = vld [vmem:[#allocation8 + $0xc8] sm:$0xff]
    %v112 = vld [vmem:[#allocation8 + $0xd0] sm:$0xff]
    %v113 = vld [vmem:[#allocation8 + $0xd8] sm:$0xff]
    %v114 = vld [vmem:[#allocation8 + $0xe0] sm:$0xff]
    %v115 = vld [vmem:[#allocation8 + $0xe8] sm:$0xff]
    %v116 = vld [vmem:[#allocation8 + $0xf0] sm:$0xff]
    %v117 = vld [vmem:[#allocation8 + $0xf8] sm:$0xff]
    %v118 = vld [vmem:[#allocation8 + $0x100] sm:$0xff]
    %v119 = vld [vmem:[#allocation8 + $0x108] sm:$0xff]
    %v120 = vld [vmem:[#allocation8 + $0x110] sm:$0xff]
    %v121 = vld [vmem:[#allocation8 + $0x118] sm:$0xff]
    %v122 = vld [vmem:[#allocation8 + $0x120] sm:$0xff]
    %v123 = vld [vmem:[#allocation8 + $0x128] sm:$0xff]
    %v124 = vld [vmem:[#allocation8 + $0x130] sm:$0xff]
    %v125 = vld [vmem:[#allocation8 + $0x138] sm:$0xff]
    %v126 = vld [vmem:[#allocation8 + $0x140] sm:$0xff]
    %v127 = vld [vmem:[#allocation8 + $0x148] sm:$0xff]
    %v128 = vld [vmem:[#allocation8 + $0x150] sm:$0xff]
    %v129 = vld [vmem:[#allocation8 + $0x158] sm:$0xff]
    %v130 = vld [vmem:[#allocation8 + $0x160] sm:$0xff]
    %v131 = vld [vmem:[#allocation8 + $0x168] sm:$0xff]
    %v132 = vld [vmem:[#allocation8 + $0x170] sm:$0xff]
    %v133 = vld [vmem:[#allocation8 + $0x178] sm:$0xff]
    %v134 = vld [vmem:[#allocation8 + $0x180] sm:$0xff]
    %v135 = vld [vmem:[#allocation8 + $0x188] sm:$0xff]
    %v136 = vld [vmem:[#allocation8 + $0x190] sm:$0xff]
    %v137 = vld [vmem:[#allocation8 + $0x198] sm:$0xff]
    %v138 = vld [vmem:[#allocation8 + $0x1a0] sm:$0xff]
    %v139 = vld [vmem:[#allocation8 + $0x1a8] sm:$0xff]
    %v140 = vld [vmem:[#allocation8 + $0x1b0] sm:$0xff]
    %v141 = vld [vmem:[#allocation8 + $0x1b8] sm:$0xff]
    %v142 = vld [vmem:[#allocation8 + $0x1c0] sm:$0xff]
    %v143 = vld [vmem:[#allocation8 + $0x1c8] sm:$0xff]
    %v144 = vld [vmem:[#allocation8 + $0x1d0] sm:$0xff]
    %v145 = vld [vmem:[#allocation8 + $0x1d8] sm:$0xff]
    %v146 = vld [vmem:[#allocation8 + $0x1e0] sm:$0xff]
    %v147 = vld [vmem:[#allocation8 + $0x1e8] sm:$0xff]
    %v148 = vld [vmem:[#allocation8 + $0x1f0] sm:$0xff]
    %v149 = vld [vmem:[#allocation8 + $0x1f8] sm:$0xff]
    %v150 = vld [vmem:[#allocation8 + $0x200] sm:$0xff]
    %v151 = vld [vmem:[#allocation8 + $0x208] sm:$0xff]
    %v152 = vld [vmem:[#allocation8 + $0x210] sm:$0xff]
    %v153 = vld [vmem:[#allocation8 + $0x218] sm:$0xff]
    %v154 = vld [vmem:[#allocation8 + $0x220] sm:$0xff]
    %v155 = vld [vmem:[#allocation8 + $0x228] sm:$0xff]
    %v156 = vld [vmem:[#allocation8 + $0x230] sm:$0xff]
    %v157 = vld [vmem:[#allocation8 + $0x238] sm:$0xff]
    %v158 = vld [vmem:[#allocation8 + $0x240] sm:$0xff]
    %v159 = vld [vmem:[#allocation8 + $0x248] sm:$0xff]
    %v160 = vld [vmem:[#allocation8 + $0x250] sm:$0xff]
    %v161 = vld [vmem:[#allocation8 + $0x258] sm:$0xff]
    %v162 = vld [vmem:[#allocation8 + $0x260] sm:$0xff]
    %v163 = vld [vmem:[#allocation8 + $0x268] sm:$0xff]
    %v164 = vld [vmem:[#allocation8 + $0x270] sm:$0xff]
    %v165 = vld [vmem:[#allocation8 + $0x278] sm:$0xff]
    %v166 = vld [vmem:[#allocation8 + $0x280] sm:$0xff]
    %v167 = vld [vmem:[#allocation8 + $0x288] sm:$0xff]
    %v168 = vld [vmem:[#allocation8 + $0x290] sm:$0xff]
    %v169 = vld [vmem:[#allocation8 + $0x298] sm:$0xff]
    %v170 = vld [vmem:[#allocation8 + $0x2a0] sm:$0xff]
    %v171 = vld [vmem:[#allocation8 + $0x2a8] sm:$0xff]
    %v172 = vld [vmem:[#allocation8 + $0x2b0] sm:$0xff]
    %v173 = vld [vmem:[#allocation8 + $0x2b8] sm:$0xff]
    %v174 = vld [vmem:[#allocation8 + $0x2c0] sm:$0xff]
    %v175 = vld [vmem:[#allocation8 + $0x2c8] sm:$0xff]
    %v176 = vld [vmem:[#allocation8 + $0x2d0] sm:$0xff]
    %v177 = vld [vmem:[#allocation8 + $0x2d8] sm:$0xff]
    %v178 = vld [vmem:[#allocation8 + $0x2e0] sm:$0xff]
    %v179 = vld [vmem:[#allocation8 + $0x2e8] sm:$0xff]
    %v180 = vld [vmem:[#allocation8 + $0x2f0] sm:$0xff]
    %v181 = vld [vmem:[#allocation8 + $0x2f8] sm:$0xff]
    %v182 = vld [vmem:[#allocation8 + $0x300] sm:$0xff]
    %v183 = vld [vmem:[#allocation8 + $0x308] sm:$0xff]
    %v184 = vld [vmem:[#allocation8 + $0x310] sm:$0xff]
    %v185 = vld [vmem:[#allocation8 + $0x318] sm:$0xff]
    %v186 = vld [vmem:[#allocation8 + $0x320] sm:$0xff]
    %v187 = vld [vmem:[#allocation8 + $0x328] sm:$0xff]
    %v188 = vld [vmem:[#allocation8 + $0x330] sm:$0xff]
    %v189 = vld [vmem:[#allocation8 + $0x338] sm:$0xff]
    %v190 = vld [vmem:[#allocation8 + $0x340] sm:$0xff]
    %v191 = vld [vmem:[#allocation8 + $0x348] sm:$0xff]
    %v192 = vld [vmem:[#allocation8 + $0x350] sm:$0xff]
    %v193 = vld [vmem:[#allocation8 + $0x358] sm:$0xff]
    %v194 = vld [vmem:[#allocation8 + $0x360] sm:$0xff]
    %v195 = vld [vmem:[#allocation8 + $0x368] sm:$0xff]
    %v196 = vld [vmem:[#allocation8 + $0x370] sm:$0xff]
    %v197 = vld [vmem:[#allocation8 + $0x378] sm:$0xff]
    %v198 = vld [vmem:[#allocation8 + $0x380] sm:$0xff]
    %v199 = vld [vmem:[#allocation8 + $0x388] sm:$0xff]
    %v200 = vld [vmem:[#allocation8 + $0x390] sm:$0xff]
    %v201 = vld [vmem:[#allocation8 + $0x398] sm:$0xff]
    %v202 = vld [vmem:[#allocation8 + $0x3a0] sm:$0xff]
    %v203 = vld [vmem:[#allocation8 + $0x3a8] sm:$0xff]
    %v204 = vld [vmem:[#allocation8 + $0x3b0] sm:$0xff]
    %v205 = vld [vmem:[#allocation8 + $0x3b8] sm:$0xff]
    %v206 = vld [vmem:[#allocation8 + $0x3c0] sm:$0xff]
    %v207 = vld [vmem:[#allocation8 + $0x3c8] sm:$0xff]
    %v208 = vld [vmem:[#allocation8 + $0x3d0] sm:$0xff]
    %v209 = vld [vmem:[#allocation8 + $0x3d8] sm:$0xff]
    %v210 = vld [vmem:[#allocation8 + $0x3e0] sm:$0xff]
    %v211 = vld [vmem:[#allocation8 + $0x3e8] sm:$0xff]
    %v212 = vld [vmem:[#allocation8 + $0x3f0] sm:$0xff]
    %v213 = vld [vmem:[#allocation8 + $0x3f8] sm:$0xff]
    %v218 = vunpack.c.l.b16 %v82
    %v219 = vunpack.c.h.b16 %v82
    %v220 = vunpack.c.l.b16 %v83
    %v221 = vunpack.c.h.b16 %v83
    %v222 = vunpack.c.l.b16 %v84
    %v223 = vunpack.c.h.b16 %v84
    %v224 = vunpack.c.l.b16 %v85
    %v225 = vunpack.c.h.b16 %v85
    %v226 = vpack.c.b16 %v218, %v218
    %v227 = vpack.c.b16 %v219, %v219
    %v228 = vpack.c.b16 %v220, %v220
    %v229 = vpack.c.b16 %v221, %v221
    %v230 = vpack.c.b16 %v222, %v222
    %v231 = vpack.c.b16 %v223, %v223
    %v232 = vpack.c.b16 %v224, %v224
    %v233 = vpack.c.b16 %v225, %v225
    %v370 = vunpack.c.l.b16 %v86
    %v371 = vunpack.c.h.b16 %v86
    %v372 = vunpack.c.l.b16 %v87
    %v373 = vunpack.c.h.b16 %v87
    %v374 = vunpack.c.l.b16 %v88
    %v375 = vunpack.c.h.b16 %v88
    %v376 = vunpack.c.l.b16 %v89
    %v377 = vunpack.c.h.b16 %v89
    %v378 = vunpack.c.l.b16 %v90
    %v379 = vunpack.c.h.b16 %v90
    %v380 = vunpack.c.l.b16 %v91
    %v381 = vunpack.c.h.b16 %v91
    %v382 = vunpack.c.l.b16 %v92
    %v383 = vunpack.c.h.b16 %v92
    %v384 = vunpack.c.l.b16 %v93
    %v385 = vunpack.c.h.b16 %v93
    %v386 = vunpack.c.l.b16 %v94
    %v387 = vunpack.c.h.b16 %v94
    %v388 = vunpack.c.l.b16 %v95
    %v389 = vunpack.c.h.b16 %v95
    %v390 = vunpack.c.l.b16 %v96
    %v391 = vunpack.c.h.b16 %v96
    %v392 = vunpack.c.l.b16 %v97
    %v393 = vunpack.c.h.b16 %v97
    %v394 = vunpack.c.l.b16 %v98
    %v395 = vunpack.c.h.b16 %v98
    %v396 = vunpack.c.l.b16 %v99
    %v397 = vunpack.c.h.b16 %v99
    %v398 = vunpack.c.l.b16 %v100
    %v399 = vunpack.c.h.b16 %v100
    %v400 = vunpack.c.l.b16 %v101
    %v401 = vunpack.c.h.b16 %v101
    %v402 = vunpack.c.l.b16 %v102
    %v403 = vunpack.c.h.b16 %v102
    %v404 = vunpack.c.l.b16 %v103
    %v405 = vunpack.c.h.b16 %v103
    %v406 = vunpack.c.l.b16 %v104
    %v407 = vunpack.c.h.b16 %v104
    %v408 = vunpack.c.l.b16 %v105
    %v409 = vunpack.c.h.b16 %v105
    %v410 = vunpack.c.l.b16 %v106
    %v411 = vunpack.c.h.b16 %v106
    %v412 = vunpack.c.l.b16 %v107
    %v413 = vunpack.c.h.b16 %v107
    %v414 = vunpack.c.l.b16 %v108
    %v415 = vunpack.c.h.b16 %v108
    %v416 = vunpack.c.l.b16 %v109
    %v417 = vunpack.c.h.b16 %v109
    %v418 = vunpack.c.l.b16 %v110
    %v419 = vunpack.c.h.b16 %v110
    %v420 = vunpack.c.l.b16 %v111
    %v421 = vunpack.c.h.b16 %v111
    %v422 = vunpack.c.l.b16 %v112
    %v423 = vunpack.c.h.b16 %v112
    %v424 = vunpack.c.l.b16 %v113
    %v425 = vunpack.c.h.b16 %v113
    %v426 = vunpack.c.l.b16 %v114
    %v427 = vunpack.c.h.b16 %v114
    %v428 = vunpack.c.l.b16 %v115
    %v429 = vunpack.c.h.b16 %v115
    %v430 = vunpack.c.l.b16 %v116
    %v431 = vunpack.c.h.b16 %v116
    %v432 = vunpack.c.l.b16 %v117
    %v433 = vunpack.c.h.b16 %v117
    %v434 = vunpack.c.l.b16 %v118
    %v435 = vunpack.c.h.b16 %v118
    %v436 = vunpack.c.l.b16 %v119
    %v437 = vunpack.c.h.b16 %v119
    %v438 = vunpack.c.l.b16 %v120
    %v439 = vunpack.c.h.b16 %v120
    %v440 = vunpack.c.l.b16 %v121
    %v441 = vunpack.c.h.b16 %v121
    %v442 = vunpack.c.l.b16 %v122
    %v443 = vunpack.c.h.b16 %v122
    %v444 = vunpack.c.l.b16 %v123
    %v445 = vunpack.c.h.b16 %v123
    %v446 = vunpack.c.l.b16 %v124
    %v447 = vunpack.c.h.b16 %v124
    %v448 = vunpack.c.l.b16 %v125
    %v449 = vunpack.c.h.b16 %v125
    %v450 = vunpack.c.l.b16 %v126
    %v451 = vunpack.c.h.b16 %v126
    %v452 = vunpack.c.l.b16 %v127
    %v453 = vunpack.c.h.b16 %v127
    %v454 = vunpack.c.l.b16 %v128
    %v455 = vunpack.c.h.b16 %v128
    %v456 = vunpack.c.l.b16 %v129
    %v457 = vunpack.c.h.b16 %v129
    %v458 = vunpack.c.l.b16 %v130
    %v459 = vunpack.c.h.b16 %v130
    %v460 = vunpack.c.l.b16 %v131
    %v461 = vunpack.c.h.b16 %v131
    %v462 = vunpack.c.l.b16 %v132
    %v463 = vunpack.c.h.b16 %v132
    %v464 = vunpack.c.l.b16 %v133
    %v465 = vunpack.c.h.b16 %v133
    %v466 = vunpack.c.l.b16 %v134
    %v467 = vunpack.c.h.b16 %v134
    %v468 = vunpack.c.l.b16 %v135
    %v469 = vunpack.c.h.b16 %v135
    %v470 = vunpack.c.l.b16 %v136
    %v471 = vunpack.c.h.b16 %v136
    %v472 = vunpack.c.l.b16 %v137
    %v473 = vunpack.c.h.b16 %v137
    %v474 = vunpack.c.l.b16 %v138
    %v475 = vunpack.c.h.b16 %v138
    %v476 = vunpack.c.l.b16 %v139
    %v477 = vunpack.c.h.b16 %v139
    %v478 = vunpack.c.l.b16 %v140
    %v479 = vunpack.c.h.b16 %v140
    %v480 = vunpack.c.l.b16 %v141
    %v481 = vunpack.c.h.b16 %v141
    %v482 = vunpack.c.l.b16 %v142
    %v483 = vunpack.c.h.b16 %v142
    %v484 = vunpack.c.l.b16 %v143
    %v485 = vunpack.c.h.b16 %v143
    %v486 = vunpack.c.l.b16 %v144
    %v487 = vunpack.c.h.b16 %v144
    %v488 = vunpack.c.l.b16 %v145
    %v489 = vunpack.c.h.b16 %v145
    %v490 = vunpack.c.l.b16 %v146
    %v491 = vunpack.c.h.b16 %v146
    %v492 = vunpack.c.l.b16 %v147
    %v493 = vunpack.c.h.b16 %v147
    %v494 = vunpack.c.l.b16 %v148
    %v495 = vunpack.c.h.b16 %v148
    %v496 = vunpack.c.l.b16 %v149
    %v497 = vunpack.c.h.b16 %v149
    %v498 = vunpack.c.l.b16 %v150
    %v499 = vunpack.c.h.b16 %v150
    %v500 = vunpack.c.l.b16 %v151
    %v501 = vunpack.c.h.b16 %v151
    %v502 = vunpack.c.l.b16 %v152
    %v503 = vunpack.c.h.b16 %v152
    %v504 = vunpack.c.l.b16 %v153
    %v505 = vunpack.c.h.b16 %v153
    %v506 = vunpack.c.l.b16 %v154
    %v507 = vunpack.c.h.b16 %v154
    %v508 = vunpack.c.l.b16 %v155
    %v509 = vunpack.c.h.b16 %v155
    %v510 = vunpack.c.l.b16 %v156
    %v511 = vunpack.c.h.b16 %v156
    %v512 = vunpack.c.l.b16 %v157
    %v513 = vunpack.c.h.b16 %v157
    %v514 = vunpack.c.l.b16 %v158
    %v515 = vunpack.c.h.b16 %v158
    %v516 = vunpack.c.l.b16 %v159
    %v517 = vunpack.c.h.b16 %v159
    %v518 = vunpack.c.l.b16 %v160
    %v519 = vunpack.c.h.b16 %v160
    %v520 = vunpack.c.l.b16 %v161
    %v521 = vunpack.c.h.b16 %v161
    %v522 = vunpack.c.l.b16 %v162
    %v523 = vunpack.c.h.b16 %v162
    %v524 = vunpack.c.l.b16 %v163
    %v525 = vunpack.c.h.b16 %v163
    %v526 = vunpack.c.l.b16 %v164
    %v527 = vunpack.c.h.b16 %v164
    %v528 = vunpack.c.l.b16 %v165
    %v529 = vunpack.c.h.b16 %v165
    %v530 = vunpack.c.l.b16 %v166
    %v531 = vunpack.c.h.b16 %v166
    %v532 = vunpack.c.l.b16 %v167
    %v533 = vunpack.c.h.b16 %v167
    %v534 = vunpack.c.l.b16 %v168
    %v535 = vunpack.c.h.b16 %v168
    %v536 = vunpack.c.l.b16 %v169
    %v537 = vunpack.c.h.b16 %v169
    %v538 = vunpack.c.l.b16 %v170
    %v539 = vunpack.c.h.b16 %v170
    %v540 = vunpack.c.l.b16 %v171
    %v541 = vunpack.c.h.b16 %v171
    %v542 = vunpack.c.l.b16 %v172
    %v543 = vunpack.c.h.b16 %v172
    %v544 = vunpack.c.l.b16 %v173
    %v545 = vunpack.c.h.b16 %v173
    %v546 = vunpack.c.l.b16 %v174
    %v547 = vunpack.c.h.b16 %v174
    %v548 = vunpack.c.l.b16 %v175
    %v549 = vunpack.c.h.b16 %v175
    %v550 = vunpack.c.l.b16 %v176
    %v551 = vunpack.c.h.b16 %v176
    %v552 = vunpack.c.l.b16 %v177
    %v553 = vunpack.c.h.b16 %v177
    %v554 = vunpack.c.l.b16 %v178
    %v555 = vunpack.c.h.b16 %v178
    %v556 = vunpack.c.l.b16 %v179
    %v557 = vunpack.c.h.b16 %v179
    %v558 = vunpack.c.l.b16 %v180
    %v559 = vunpack.c.h.b16 %v180
    %v560 = vunpack.c.l.b16 %v181
    %v561 = vunpack.c.h.b16 %v181
    %v562 = vunpack.c.l.b16 %v182
    %v563 = vunpack.c.h.b16 %v182
    %v564 = vunpack.c.l.b16 %v183
    %v565 = vunpack.c.h.b16 %v183
    %v566 = vunpack.c.l.b16 %v184
    %v567 = vunpack.c.h.b16 %v184
    %v568 = vunpack.c.l.b16 %v185
    %v569 = vunpack.c.h.b16 %v185
    %v570 = vunpack.c.l.b16 %v186
    %v571 = vunpack.c.h.b16 %v186
    %v572 = vunpack.c.l.b16 %v187
    %v573 = vunpack.c.h.b16 %v187
    %v574 = vunpack.c.l.b16 %v188
    %v575 = vunpack.c.h.b16 %v188
    %v576 = vunpack.c.l.b16 %v189
    %v577 = vunpack.c.h.b16 %v189
    %v578 = vunpack.c.l.b16 %v190
    %v579 = vunpack.c.h.b16 %v190
    %v580 = vunpack.c.l.b16 %v191
    %v581 = vunpack.c.h.b16 %v191
    %v582 = vunpack.c.l.b16 %v192
    %v583 = vunpack.c.h.b16 %v192
    %v584 = vunpack.c.l.b16 %v193
    %v585 = vunpack.c.h.b16 %v193
    %v586 = vunpack.c.l.b16 %v194
    %v587 = vunpack.c.h.b16 %v194
    %v588 = vunpack.c.l.b16 %v195
    %v589 = vunpack.c.h.b16 %v195
    %v590 = vunpack.c.l.b16 %v196
    %v591 = vunpack.c.h.b16 %v196
    %v592 = vunpack.c.l.b16 %v197
    %v593 = vunpack.c.h.b16 %v197
    %v594 = vunpack.c.l.b16 %v198
    %v595 = vunpack.c.h.b16 %v198
    %v596 = vunpack.c.l.b16 %v199
    %v597 = vunpack.c.h.b16 %v199
    %v598 = vunpack.c.l.b16 %v200
    %v599 = vunpack.c.h.b16 %v200
    %v600 = vunpack.c.l.b16 %v201
    %v601 = vunpack.c.h.b16 %v201
    %v602 = vunpack.c.l.b16 %v202
    %v603 = vunpack.c.h.b16 %v202
    %v604 = vunpack.c.l.b16 %v203
    %v605 = vunpack.c.h.b16 %v203
    %v606 = vunpack.c.l.b16 %v204
    %v607 = vunpack.c.h.b16 %v204
    %v608 = vunpack.c.l.b16 %v205
    %v609 = vunpack.c.h.b16 %v205
    %v610 = vunpack.c.l.b16 %v206
    %v611 = vunpack.c.h.b16 %v206
    %v612 = vunpack.c.l.b16 %v207
    %v613 = vunpack.c.h.b16 %v207
    %v614 = vunpack.c.l.b16 %v208
    %v615 = vunpack.c.h.b16 %v208
    %v616 = vunpack.c.l.b16 %v209
    %v617 = vunpack.c.h.b16 %v209
    %v618 = vunpack.c.l.b16 %v210
    %v619 = vunpack.c.h.b16 %v210
    %v620 = vunpack.c.l.b16 %v211
    %v621 = vunpack.c.h.b16 %v211
    %v622 = vunpack.c.l.b16 %v212
    %v623 = vunpack.c.h.b16 %v212
    %v624 = vunpack.c.l.b16 %v213
    %v625 = vunpack.c.h.b16 %v213
    %v626 = vpack.c.b16 %v372, %v370
    %v627 = vpack.c.b16 %v373, %v371
    %v628 = vpack.c.b16 %v376, %v374
    %v629 = vpack.c.b16 %v377, %v375
    %v630 = vpack.c.b16 %v380, %v378
    %v631 = vpack.c.b16 %v381, %v379
    %v632 = vpack.c.b16 %v384, %v382
    %v633 = vpack.c.b16 %v385, %v383
    %v634 = vpack.c.b16 %v388, %v386
    %v635 = vpack.c.b16 %v389, %v387
    %v636 = vpack.c.b16 %v392, %v390
    %v637 = vpack.c.b16 %v393, %v391
    %v638 = vpack.c.b16 %v396, %v394
    %v639 = vpack.c.b16 %v397, %v395
    %v640 = vpack.c.b16 %v400, %v398
    %v641 = vpack.c.b16 %v401, %v399
    %v642 = vpack.c.b16 %v404, %v402
    %v643 = vpack.c.b16 %v405, %v403
    %v644 = vpack.c.b16 %v408, %v406
    %v645 = vpack.c.b16 %v409, %v407
    %v646 = vpack.c.b16 %v412, %v410
    %v647 = vpack.c.b16 %v413, %v411
    %v648 = vpack.c.b16 %v416, %v414
    %v649 = vpack.c.b16 %v417, %v415
    %v650 = vpack.c.b16 %v420, %v418
    %v651 = vpack.c.b16 %v421, %v419
    %v652 = vpack.c.b16 %v424, %v422
    %v653 = vpack.c.b16 %v425, %v423
    %v654 = vpack.c.b16 %v428, %v426
    %v655 = vpack.c.b16 %v429, %v427
    %v656 = vpack.c.b16 %v432, %v430
    %v657 = vpack.c.b16 %v433, %v431
    %v658 = vpack.c.b16 %v436, %v434
    %v659 = vpack.c.b16 %v437, %v435
    %v660 = vpack.c.b16 %v440, %v438
    %v661 = vpack.c.b16 %v441, %v439
    %v662 = vpack.c.b16 %v444, %v442
    %v663 = vpack.c.b16 %v445, %v443
    %v664 = vpack.c.b16 %v448, %v446
    %v665 = vpack.c.b16 %v449, %v447
    %v666 = vpack.c.b16 %v452, %v450
    %v667 = vpack.c.b16 %v453, %v451
    %v668 = vpack.c.b16 %v456, %v454
    %v669 = vpack.c.b16 %v457, %v455
    %v670 = vpack.c.b16 %v460, %v458
    %v671 = vpack.c.b16 %v461, %v459
    %v672 = vpack.c.b16 %v464, %v462
    %v673 = vpack.c.b16 %v465, %v463
    %v674 = vpack.c.b16 %v468, %v466
    %v675 = vpack.c.b16 %v469, %v467
    %v676 = vpack.c.b16 %v472, %v470
    %v677 = vpack.c.b16 %v473, %v471
    %v678 = vpack.c.b16 %v476, %v474
    %v679 = vpack.c.b16 %v477, %v475
    %v680 = vpack.c.b16 %v480, %v478
    %v681 = vpack.c.b16 %v481, %v479
    %v682 = vpack.c.b16 %v484, %v482
    %v683 = vpack.c.b16 %v485, %v483
    %v684 = vpack.c.b16 %v488, %v486
    %v685 = vpack.c.b16 %v489, %v487
    %v686 = vpack.c.b16 %v492, %v490
    %v687 = vpack.c.b16 %v493, %v491
    %v688 = vpack.c.b16 %v496, %v494
    %v689 = vpack.c.b16 %v497, %v495
    %v690 = vpack.c.b16 %v500, %v498
    %v691 = vpack.c.b16 %v501, %v499
    %v692 = vpack.c.b16 %v504, %v502
    %v693 = vpack.c.b16 %v505, %v503
    %v694 = vpack.c.b16 %v508, %v506
    %v695 = vpack.c.b16 %v509, %v507
    %v696 = vpack.c.b16 %v512, %v510
    %v697 = vpack.c.b16 %v513, %v511
    %v698 = vpack.c.b16 %v516, %v514
    %v699 = vpack.c.b16 %v517, %v515
    %v700 = vpack.c.b16 %v520, %v518
    %v701 = vpack.c.b16 %v521, %v519
    %v702 = vpack.c.b16 %v524, %v522
    %v703 = vpack.c.b16 %v525, %v523
    %v704 = vpack.c.b16 %v528, %v526
    %v705 = vpack.c.b16 %v529, %v527
    %v706 = vpack.c.b16 %v532, %v530
    %v707 = vpack.c.b16 %v533, %v531
    %v708 = vpack.c.b16 %v536, %v534
    %v709 = vpack.c.b16 %v537, %v535
    %v710 = vpack.c.b16 %v540, %v538
    %v711 = vpack.c.b16 %v541, %v539
    %v712 = vpack.c.b16 %v544, %v542
    %v713 = vpack.c.b16 %v545, %v543
    %v714 = vpack.c.b16 %v548, %v546
    %v715 = vpack.c.b16 %v549, %v547
    %v716 = vpack.c.b16 %v552, %v550
    %v717 = vpack.c.b16 %v553, %v551
    %v718 = vpack.c.b16 %v556, %v554
    %v719 = vpack.c.b16 %v557, %v555
    %v720 = vpack.c.b16 %v560, %v558
    %v721 = vpack.c.b16 %v561, %v559
    %v722 = vpack.c.b16 %v564, %v562
    %v723 = vpack.c.b16 %v565, %v563
    %v724 = vpack.c.b16 %v568, %v566
    %v725 = vpack.c.b16 %v569, %v567
    %v726 = vpack.c.b16 %v572, %v570
    %v727 = vpack.c.b16 %v573, %v571
    %v728 = vpack.c.b16 %v576, %v574
    %v729 = vpack.c.b16 %v577, %v575
    %v730 = vpack.c.b16 %v580, %v578
    %v731 = vpack.c.b16 %v581, %v579
    %v732 = vpack.c.b16 %v584, %v582
    %v733 = vpack.c.b16 %v585, %v583
    %v734 = vpack.c.b16 %v588, %v586
    %v735 = vpack.c.b16 %v589, %v587
    %v736 = vpack.c.b16 %v592, %v590
    %v737 = vpack.c.b16 %v593, %v591
    %v738 = vpack.c.b16 %v596, %v594
    %v739 = vpack.c.b16 %v597, %v595
    %v740 = vpack.c.b16 %v600, %v598
    %v741 = vpack.c.b16 %v601, %v599
    %v742 = vpack.c.b16 %v604, %v602
    %v743 = vpack.c.b16 %v605, %v603
    %v744 = vpack.c.b16 %v608, %v606
    %v745 = vpack.c.b16 %v609, %v607
    %v746 = vpack.c.b16 %v612, %v610
    %v747 = vpack.c.b16 %v613, %v611
    %v748 = vpack.c.b16 %v616, %v614
    %v749 = vpack.c.b16 %v617, %v615
    %v750 = vpack.c.b16 %v620, %v618
    %v751 = vpack.c.b16 %v621, %v619
    %v752 = vpack.c.b16 %v624, %v622
    %v753 = vpack.c.b16 %v625, %v623
    %882 = vmatpush.bf16.msra.mxu0 %v640
    %883 = vmatpush.bf16.msra.mxu0 %v638
    %884 = vmatpush.bf16.msra.mxu0 %v636
    %885 = vmatpush.bf16.msra.mxu0 %v634
    %886 = vmatpush.bf16.msra.mxu0 %v632
    %887 = vmatpush.bf16.msra.mxu0 %v630
    %888 = vmatpush.bf16.msra.mxu0 %v628
    %889 = vmatpush.bf16.msra.mxu0 %v626
    %890 = vmatmul.bf16.gmra.mxu0 %v226
    %v891 = vpop.f32.mrf.mxu0
    %v892 = vadd.f32 0.0, %v891
    %v893 = vpop.f32.mrf.mxu0
    %894 = vdwg.mxu0
    %895 = vmatpush.bf16.msra.mxu0 %v656
    %896 = vmatpush.bf16.msra.mxu0 %v654
    %897 = vmatpush.bf16.msra.mxu0 %v652
    %898 = vmatpush.bf16.msra.mxu0 %v650
    %899 = vmatpush.bf16.msra.mxu0 %v648
    %900 = vmatpush.bf16.msra.mxu0 %v646
    %901 = vmatpush.bf16.msra.mxu0 %v644
    %902 = vmatpush.bf16.msra.mxu0 %v642
    %903 = vmatmul.bf16.gmra.mxu0 %v227
    %v904 = vpop.f32.mrf.mxu0
    %v905 = vadd.f32 %v892, %v904
    %v906 = vpop.f32.mrf.mxu0
    %907 = vdwg.mxu0
    %908 = vmatpush.bf16.msra.mxu0 %v672
    %909 = vmatpush.bf16.msra.mxu0 %v670
    %910 = vmatpush.bf16.msra.mxu0 %v668
    %911 = vmatpush.bf16.msra.mxu0 %v666
    %912 = vmatpush.bf16.msra.mxu0 %v664
    %913 = vmatpush.bf16.msra.mxu0 %v662
    %914 = vmatpush.bf16.msra.mxu0 %v660
    %915 = vmatpush.bf16.msra.mxu0 %v658
    %916 = vmatmul.bf16.gmra.mxu0 %v228
    %v917 = vpop.f32.mrf.mxu0
    %v918 = vadd.f32 %v905, %v917
    %v919 = vpop.f32.mrf.mxu0
    %920 = vdwg.mxu0
    %921 = vmatpush.bf16.msra.mxu0 %v688
    %922 = vmatpush.bf16.msra.mxu0 %v686
    %923 = vmatpush.bf16.msra.mxu0 %v684
    %924 = vmatpush.bf16.msra.mxu0 %v682
    %925 = vmatpush.bf16.msra.mxu0 %v680
    %926 = vmatpush.bf16.msra.mxu0 %v678
    %927 = vmatpush.bf16.msra.mxu0 %v676
    %928 = vmatpush.bf16.msra.mxu0 %v674
    %929 = vmatmul.bf16.gmra.mxu0 %v229
    %v930 = vpop.f32.mrf.mxu0
    %v931 = vadd.f32 %v918, %v930
    %v932 = vpop.f32.mrf.mxu0
    %933 = vdwg.mxu0
    %934 = vmatpush.bf16.msra.mxu0 %v704
    %935 = vmatpush.bf16.msra.mxu0 %v702
    %936 = vmatpush.bf16.msra.mxu0 %v700
    %937 = vmatpush.bf16.msra.mxu0 %v698
    %938 = vmatpush.bf16.msra.mxu0 %v696
    %939 = vmatpush.bf16.msra.mxu0 %v694
    %940 = vmatpush.bf16.msra.mxu0 %v692
    %941 = vmatpush.bf16.msra.mxu0 %v690
    %942 = vmatmul.bf16.gmra.mxu0 %v230
    %v943 = vpop.f32.mrf.mxu0
    %v944 = vadd.f32 %v931, %v943
    %v945 = vpop.f32.mrf.mxu0
    %946 = vdwg.mxu0
    %947 = vmatpush.bf16.msra.mxu0 %v720
    %948 = vmatpush.bf16.msra.mxu0 %v718
    %949 = vmatpush.bf16.msra.mxu0 %v716
    %950 = vmatpush.bf16.msra.mxu0 %v714
    %951 = vmatpush.bf16.msra.mxu0 %v712
    %952 = vmatpush.bf16.msra.mxu0 %v710
    %953 = vmatpush.bf16.msra.mxu0 %v708
    %954 = vmatpush.bf16.msra.mxu0 %v706
    %955 = vmatmul.bf16.gmra.mxu0 %v231
    %v956 = vpop.f32.mrf.mxu0
    %v957 = vadd.f32 %v944, %v956
    %v958 = vpop.f32.mrf.mxu0
    %959 = vdwg.mxu0
    %960 = vmatpush.bf16.msra.mxu0 %v736
    %961 = vmatpush.bf16.msra.mxu0 %v734
    %962 = vmatpush.bf16.msra.mxu0 %v732
    %963 = vmatpush.bf16.msra.mxu0 %v730
    %964 = vmatpush.bf16.msra.mxu0 %v728
    %965 = vmatpush.bf16.msra.mxu0 %v726
    %966 = vmatpush.bf16.msra.mxu0 %v724
    %967 = vmatpush.bf16.msra.mxu0 %v722
    %968 = vmatmul.bf16.gmra.mxu0 %v232
    %v969 = vpop.f32.mrf.mxu0
    %v970 = vadd.f32 %v957, %v969
    %v971 = vpop.f32.mrf.mxu0
    %972 = vdwg.mxu0
    %973 = vmatpush.bf16.msra.mxu0 %v752
    %974 = vmatpush.bf16.msra.mxu0 %v750
    %975 = vmatpush.bf16.msra.mxu0 %v748
    %976 = vmatpush.bf16.msra.mxu0 %v746
    %977 = vmatpush.bf16.msra.mxu0 %v744
    %978 = vmatpush.bf16.msra.mxu0 %v742
    %979 = vmatpush.bf16.msra.mxu0 %v740
    %980 = vmatpush.bf16.msra.mxu0 %v738
    %981 = vmatmul.bf16.gmra.mxu0 %v233
    %v982 = vpop.f32.mrf.mxu0
    %v983 = vadd.f32 %v970, %v982
    %v984 = vpop.f32.mrf.mxu0
    %985 = vdwg.mxu0
    %986 = vmatpush.bf16.msra.mxu0 %v641
    %987 = vmatpush.bf16.msra.mxu0 %v639
    %988 = vmatpush.bf16.msra.mxu0 %v637
    %989 = vmatpush.bf16.msra.mxu0 %v635
    %990 = vmatpush.bf16.msra.mxu0 %v633
    %991 = vmatpush.bf16.msra.mxu0 %v631
    %992 = vmatpush.bf16.msra.mxu0 %v629
    %993 = vmatpush.bf16.msra.mxu0 %v627
    %994 = vmatmul.bf16.gmra.mxu0 %v226
    %v995 = vpop.f32.mrf.mxu0
    %v996 = vadd.f32 0.0, %v995
    %v997 = vpop.f32.mrf.mxu0
    %998 = vdwg.mxu0
    %999 = vmatpush.bf16.msra.mxu0 %v657
    %1000 = vmatpush.bf16.msra.mxu0 %v655
    %1001 = vmatpush.bf16.msra.mxu0 %v653
    %1002 = vmatpush.bf16.msra.mxu0 %v651
    %1003 = vmatpush.bf16.msra.mxu0 %v649
    %1004 = vmatpush.bf16.msra.mxu0 %v647
    %1005 = vmatpush.bf16.msra.mxu0 %v645
    %1006 = vmatpush.bf16.msra.mxu0 %v643
    %1007 = vmatmul.bf16.gmra.mxu0 %v227
    %v1008 = vpop.f32.mrf.mxu0
    %v1009 = vadd.f32 %v996, %v1008
    %v1010 = vpop.f32.mrf.mxu0
    %1011 = vdwg.mxu0
    %1012 = vmatpush.bf16.msra.mxu0 %v673
    %1013 = vmatpush.bf16.msra.mxu0 %v671
    %1014 = vmatpush.bf16.msra.mxu0 %v669
    %1015 = vmatpush.bf16.msra.mxu0 %v667
    %1016 = vmatpush.bf16.msra.mxu0 %v665
    %1017 = vmatpush.bf16.msra.mxu0 %v663
    %1018 = vmatpush.bf16.msra.mxu0 %v661
    %1019 = vmatpush.bf16.msra.mxu0 %v659
    %1020 = vmatmul.bf16.gmra.mxu0 %v228
    %v1021 = vpop.f32.mrf.mxu0
    %v1022 = vadd.f32 %v1009, %v1021
    %v1023 = vpop.f32.mrf.mxu0
    %1024 = vdwg.mxu0
    %1025 = vmatpush.bf16.msra.mxu0 %v689
    %1026 = vmatpush.bf16.msra.mxu0 %v687
    %1027 = vmatpush.bf16.msra.mxu0 %v685
    %1028 = vmatpush.bf16.msra.mxu0 %v683
    %1029 = vmatpush.bf16.msra.mxu0 %v681
    %1030 = vmatpush.bf16.msra.mxu0 %v679
    %1031 = vmatpush.bf16.msra.mxu0 %v677
    %1032 = vmatpush.bf16.msra.mxu0 %v675
    %1033 = vmatmul.bf16.gmra.mxu0 %v229
    %v1034 = vpop.f32.mrf.mxu0
    %v1035 = vadd.f32 %v1022, %v1034
    %v1036 = vpop.f32.mrf.mxu0
    %1037 = vdwg.mxu0
    %1038 = vmatpush.bf16.msra.mxu0 %v705
    %1039 = vmatpush.bf16.msra.mxu0 %v703
    %1040 = vmatpush.bf16.msra.mxu0 %v701
    %1041 = vmatpush.bf16.msra.mxu0 %v699
    %1042 = vmatpush.bf16.msra.mxu0 %v697
    %1043 = vmatpush.bf16.msra.mxu0 %v695
    %1044 = vmatpush.bf16.msra.mxu0 %v693
    %1045 = vmatpush.bf16.msra.mxu0 %v691
    %1046 = vmatmul.bf16.gmra.mxu0 %v230
    %v1047 = vpop.f32.mrf.mxu0
    %v1048 = vadd.f32 %v1035, %v1047
    %v1049 = vpop.f32.mrf.mxu0
    %1050 = vdwg.mxu0
    %1051 = vmatpush.bf16.msra.mxu0 %v721
    %1052 = vmatpush.bf16.msra.mxu0 %v719
    %1053 = vmatpush.bf16.msra.mxu0 %v717
    %1054 = vmatpush.bf16.msra.mxu0 %v715
    %1055 = vmatpush.bf16.msra.mxu0 %v713
    %1056 = vmatpush.bf16.msra.mxu0 %v711
    %1057 = vmatpush.bf16.msra.mxu0 %v709
    %1058 = vmatpush.bf16.msra.mxu0 %v707
    %1059 = vmatmul.bf16.gmra.mxu0 %v231
    %v1060 = vpop.f32.mrf.mxu0
    %v1061 = vadd.f32 %v1048, %v1060
    %v1062 = vpop.f32.mrf.mxu0
    %1063 = vdwg.mxu0
    %1064 = vmatpush.bf16.msra.mxu0 %v737
    %1065 = vmatpush.bf16.msra.mxu0 %v735
    %1066 = vmatpush.bf16.msra.mxu0 %v733
    %1067 = vmatpush.bf16.msra.mxu0 %v731
    %1068 = vmatpush.bf16.msra.mxu0 %v729
    %1069 = vmatpush.bf16.msra.mxu0 %v727
    %1070 = vmatpush.bf16.msra.mxu0 %v725
    %1071 = vmatpush.bf16.msra.mxu0 %v723
    %1072 = vmatmul.bf16.gmra.mxu0 %v232
    %v1073 = vpop.f32.mrf.mxu0
    %v1074 = vadd.f32 %v1061, %v1073
    %v1075 = vpop.f32.mrf.mxu0
    %1076 = vdwg.mxu0
    %1077 = vmatpush.bf16.msra.mxu0 %v753
    %1078 = vmatpush.bf16.msra.mxu0 %v751
    %1079 = vmatpush.bf16.msra.mxu0 %v749
    %1080 = vmatpush.bf16.msra.mxu0 %v747
    %1081 = vmatpush.bf16.msra.mxu0 %v745
    %1082 = vmatpush.bf16.msra.mxu0 %v743
    %1083 = vmatpush.bf16.msra.mxu0 %v741
    %1084 = vmatpush.bf16.msra.mxu0 %v739
    %1085 = vmatmul.bf16.gmra.mxu0 %v233
    %v1086 = vpop.f32.mrf.mxu0
    %v1087 = vadd.f32 %v1074, %v1086
    %v1088 = vpop.f32.mrf.mxu0
    %1089 = vdwg.mxu0
    %v1090 = vadd.f32 %v80, %v983
    %v1091 = vadd.f32 %v81, %v1087
    %1092 = vst [vmem:[#allocation2] sm:$0xff] %v1090
    %1093 = vst [vmem:[#allocation2 + $0x8] sm:$0xff] %v1091
    // Predicated region
    $region38: #{tpu_custom_call.1} parent=1 // pred_check
      %p1094 = pneg %p74
    $region39: #{tpu_custom_call.1} parent=1 // pred_check_branch
      %1096 = sbr.rel (%p1094) target = $region41
    $region40: #{tpu_custom_call.1} parent=1 // pred_region
      %s1097 = sld [smem:[#allocation3]]
      %s1098 = sld [smem:[#allocation3 + $0x1]]
      %s1099 = sld [smem:[#allocation3 + $0x2]]
      %s1100 = ssub.f32 1.0, %s1099
      %v1101 = vld [vmem:[#allocation2] sm:$0xff]
      %v1102 = vld [vmem:[#allocation2 + $0x8] sm:$0xff]
      %v1103 = vstv %s1097
      %v1104 = vsub.f32 %v1101, %v1103
      %v1105 = vsub.f32 %v1102, %v1103
      %v1106 = vstv %s1098
      %v1107 = vmul.f32 %v1104, %v1106
      %v1108 = vmul.f32 %v1105, %v1106
      %v1109 = vxor.u32 %v1107, 2147483648
      %v1110 = vxor.u32 %v1108, 2147483648
      %v1111 = vmul.f32 %v1109, 1.442695
      %v1112 = vpow.pop %v1111
      %v1113 = vmul.f32 %v1110, 1.442695
      %v1114 = vpow.pop %v1113
      %v1115 = vadd.f32 %v1112, 1.0
      %v1116 = vadd.f32 %v1114, 1.0
      %v1117 = vrcp.pop %v1115
      %v1118 = vmul.f32 %v1115, %v1117
      %v1119 = vsub.f32 1.0, %v1118
      %v1120 = vmul.f32 %v1117, %v1119
      %v1121 = vadd.f32 %v1117, %v1120
      %vm1122 = vweird.f32 %v1115
      %vm1123 = vweird.f32 %v1117
      %vm1124 = vmor %vm1122, %vm1123
      %v1125 = vsel %vm1124, %v1117, %v1121
      %v1126 = vand.u32 2147483647, %v1115
      %vm1127 = vcmp.eq.f32.partialorder %v1126, 8.507059e+37
      %v1128 = vand.u32 %v1115, 2147483648
      %v1129 = vor.u32 1.1754944e-38, %v1128
      %v1130 = vsel %vm1127, %v1129, %v1125
      %v1131 = vmul.f32 1.0, %v1130
      %v1132 = vrcp.pop %v1116
      %v1133 = vmul.f32 %v1116, %v1132
      %v1134 = vsub.f32 1.0, %v1133
      %v1135 = vmul.f32 %v1132, %v1134
      %v1136 = vadd.f32 %v1132, %v1135
      %vm1137 = vweird.f32 %v1116
      %vm1138 = vweird.f32 %v1132
      %vm1139 = vmor %vm1137, %vm1138
      %v1140 = vsel %vm1139, %v1132, %v1136
      %v1141 = vand.u32 2147483647, %v1116
      %vm1142 = vcmp.eq.f32.partialorder %v1141, 8.507059e+37
      %v1143 = vand.u32 %v1116, 2147483648
      %v1144 = vor.u32 1.1754944e-38, %v1143
      %v1145 = vsel %vm1142, %v1144, %v1140
      %v1146 = vmul.f32 1.0, %v1145
      %v1147 = vstv %s1100
      %v1148 = vmul.f32 %v1147, %v1131
      %v1149 = vmul.f32 %v1147, %v1146
      %v1150 = vstv %s1099
      %v1151 = vadd.f32 %v1150, %v1148
      %v1152 = vadd.f32 %v1150, %v1149
      %v1153 = vld [vmem:[#allocation10] sm:$0xff]
      %v1154 = vld [vmem:[#allocation10 + $0x8] sm:$0xff]
      %v1155 = vmul.f32 %v1153, %v1151
      %v1156 = vmul.f32 %v1154, %v1152
      %1157 = vst [vmem:[#allocation11] sm:$0xff] %v1155
      %1158 = vst [vmem:[#allocation11 + $0x8] sm:$0xff] %v1156
    $region41: #{tpu_custom_call.1} parent=1 // pred_fallthru
      _
    // Predicated region
    $region42: #{tpu_custom_call.1} parent=1 // pred_check
      _
    $region43: #{tpu_custom_call.1} parent=1 // pred_check_branch
      %1160 = sbr.rel (0) target = $region45
    $region44: #{tpu_custom_call.1} parent=1 // pred_region
      %1162 = vsyncadd [#allocation5], 0
      %s1164 = sshll.u32 [#allocation11], 4
      %s1165 = int_to_ptr.vmem [resolvable:$true] %s1164
      %s1166 = sshll.u32 %s4, 4
      %s1167 = int_to_ptr.hbm [resolvable:$true] %s1166
      %1169 = dma.vmem_to_hbm [thread:$0]  %s1165, 256, %s1167, [#allocation5]
    $region45: #{tpu_custom_call.1} parent=1 // pred_fallthru
      _
    // Predicated region
    $region46: #{tpu_custom_call.1} parent=1 // pred_check
      _
    $region47: #{tpu_custom_call.1} parent=1 // pred_check_branch
      %1171 = sbr.rel (0) target = $region49
    $region48: #{tpu_custom_call.1} parent=1 // pred_region
      %1173 = dma.done [#allocation5], 256
    $region49: #{tpu_custom_call.1} parent=1 // pred_fallthru
      _
    %1174 = vsyncpa [#allocation4], 1
    %1175 = vsyncpa [#allocation9], 1
    %1176 = vsyncpa [#allocation5], 1
    %1177 = vsyncpa [#allocation6], 1

</llo_original>
